<compile_context>
chip_gen: v6e
topology: v6e:2x2x1
jax: 0.10.0
libtpu: 0.0.40
codegen_flags: <defaults>
</compile_context>

<pallas_src>
import jax
import jax.numpy as jnp
from jax.experimental import pallas as pl
from jax.experimental.pallas import tpu as pltpu

_NUM_BOND_CLASSES = 5
_SUBLANE_PAD = 8
_LANE_ALIGN = 128
_MAX_LANE_TILE = 32768        # (8, 32K) bf16 block = 512 KiB/buffer; fits scoped VMEM everywhere
_CNT_ROW = _SUBLANE_PAD - 1   # pad sublane that carries the masked-row count


def _round_up(x, m):
    return ((x + m - 1) // m) * m


def _num_tensorcores():
    """2 on dual-TensorCore (megacore) parts, 1 on v5e/v6e; decides the parallel split."""
    try:
        dev = jax.devices()[0]
        if dev.platform != "tpu":
            return 1
        kind = getattr(dev, "device_kind", "").lower()
        if any(tag in kind for tag in ("v4", "v5p", "v7")):
            return 2
    except Exception:
        pass
    return 1


def _lane_reduce_128(x):
    """Sum (r, k*128) -> (r, 128) using only vreg-aligned slices + a VALU add tree."""
    k = x.shape[-1] // _LANE_ALIGN
    extra = None
    while k > 1:
        if k % 2:
            tail = x[:, (k - 1) * _LANE_ALIGN:]
            extra = tail if extra is None else extra + tail
            k -= 1
            x = x[:, :k * _LANE_ALIGN]
        half = (k // 2) * _LANE_ALIGN
        x = x[:, :half] + x[:, half:]
        k //= 2
    return x if extra is None else x + extra


def _bond_ce_kernel(pred_ref, code_ref, acc_ref):
    """One grid step: (8, T) bf16 logits + (1, T) codes -> resident (8, 128) acc.

    acc rows 0..4 accumulate per-class BCE sums; row 7 accumulates the number of
    masked-in rows (that pad row's CE contribution is exactly 0, so the fold is free).
    """

    @pl.when(pl.program_id(1) == 0)
    def _():
        acc_ref[...] = jnp.zeros_like(acc_ref)

    pred = pred_ref[...].astype(jnp.float32)                 # (8, T) compute in f32
    codes = code_ref[...]                                    # (1, T) int32

    # log-softmax over the class axis (sublanes).  Pad class rows hold -inf so
    # exp() is exactly 0 and they never perturb the softmax or the CE.
    m = jnp.max(pred, axis=0, keepdims=True)                 # (1, T)
    shifted = pred - m
    e = jnp.exp(shifted)                                     # EUP, full height
    s = jnp.sum(e, axis=0, keepdims=True)                    # (1, T)
    log_z = jnp.log(s)                                       # EUP, 1/8 height

    # per-element BCE log term with NO full-height divide:
    #   target class     : log p       = shifted    - log_z
    #   non-target class : log (1 - p) = log(s - e) - log_z
    # both clamped at -100 exactly like torch.nn.BCELoss.
    row = jax.lax.broadcasted_iota(jnp.int32, pred.shape, 0)
    picked = jnp.where(row == codes, shifted, jnp.log(s - e))   # (8, T)
    log_term = jnp.maximum(picked - log_z, -100.0)              # (8, T)

    mask_f = (codes >= 0).astype(jnp.float32)                   # (1, T)
    contrib = log_term * (0.0 - mask_f)                         # (8, T): +CE or 0

    # reduce to one lane tile before touching the resident accumulator so the
    # read-modify-write is a single vreg, not T/128 of them.
    part = _lane_reduce_128(contrib)                            # (8, 128)
    cnt = _lane_reduce_128(mask_f)                              # (1, 128)
    row128 = jax.lax.broadcasted_iota(
        jnp.int32, (_SUBLANE_PAD, _LANE_ALIGN), 0)
    acc_ref[...] += part + jnp.where(row128 == _CNT_ROW, cnt, 0.0)


@jax.jit
def bond_metrics_ce_update(pred_E, true_E):
    """Returns (total_ce[d], total_samples) — one metric-update step."""
    d = pred_E.shape[-1]
    tgt_flat = true_E.reshape(-1, d)                          # (N, d)
    n = tgt_flat.shape[0]

    ncore = _num_tensorcores()
    per_core = -(-n // ncore)
    tile = min(_round_up(max(per_core, 1), _LANE_ALIGN), _MAX_LANE_TILE)
    n_pad = _round_up(n, ncore * tile)
    nsteps = n_pad // (ncore * tile)

    # pack the one-hot target into an int32 class code (-1 == masked row);
    # far less HBM traffic than shipping the dense padded one-hot slab.
    labels = jnp.argmax(tgt_flat, axis=-1).astype(jnp.int32)
    has_bond = jnp.any(tgt_flat != 0, axis=-1)
    codes = jnp.where(has_bond, labels, -1)
    codes = jnp.pad(codes, (0, n_pad - n), constant_values=-1).reshape(1, n_pad)

    # bf16 slab halves both the wrapper's HBM write and the kernel's HBM read;
    # compute stays f32 inside the kernel.  Sample-dim padding is zeros (masked
    # via code=-1); class dim d -> 8 sublanes padded with -inf.
    pred_flat = pred_E.reshape(-1, d).astype(jnp.bfloat16)
    pred_pad = jnp.pad(pred_flat, ((0, n_pad - n), (0, 0)))
    pred_t = jnp.pad(pred_pad.T, ((0, _SUBLANE_PAD - d), (0, 0)),
                     constant_values=float("-inf"))           # (8, n_pad) bf16

    acc_out = pl.pallas_call(
        _bond_ce_kernel,
        out_shape=jax.ShapeDtypeStruct(
            (ncore * _SUBLANE_PAD, _LANE_ALIGN), jnp.float32),
        grid_spec=pltpu.PrefetchScalarGridSpec(
            num_scalar_prefetch=0,
            grid=(ncore, nsteps),
            in_specs=[
                pl.BlockSpec((_SUBLANE_PAD, tile),
                             lambda c, i: (0, c * nsteps + i)),
                pl.BlockSpec((1, tile),
                             lambda c, i: (0, c * nsteps + i)),
            ],
            out_specs=pl.BlockSpec((_SUBLANE_PAD, _LANE_ALIGN),
                                   lambda c, i: (c, 0))),
        compiler_params=pltpu.CompilerParams(
            dimension_semantics=("parallel", "arbitrary"),
            vmem_limit_bytes=32 * 1024 * 1024),
    )(pred_t, codes)

    acc = acc_out.reshape(ncore, _SUBLANE_PAD, _LANE_ALIGN).sum(axis=(0, 2))
    total_ce = acc[:d]                                        # (d,)
    total_samples = acc[_CNT_ROW]                             # scalar
    return total_ce, total_samples


class TrainMolecularMetricsDiscrete:
    """JAX/Pallas port of the bond-CE metric hot path (stateful per-class BCE).

    The RDKit-based SamplingMolecularRDKitMetrics module in the same file only
    does RDKit chemistry checks and file I/O, which have no tensor math to put
    on the TPU; the numerical metric path translated here is the bond-CE one.
    """

    _KEYS = ("NoBondCE", "SingleCE", "DoubleCE", "TripleCE", "AromaticCE")

    def __init__(self, dataset_infos=None):
        del dataset_infos  # unused, as in the reference module
        self.reset()

    def __call__(self, masked_pred_X, masked_pred_E, true_X, true_E, log: bool):
        del masked_pred_X, true_X  # X metrics are not tracked in the reference
        ce, samples = bond_metrics_ce_update(masked_pred_E, true_E)
        self.total_ce = self.total_ce + ce
        self.total_samples = self.total_samples + samples
        if log:
            computed = self.compute()
            # TODO(synk): wandb.log / RDKit molecule-validity checks + SMILES file
            # dumps have no Pallas/JAX equivalent; values are only returned here.
            return {"train/" + k: v for k, v in computed.items()}
        return None

    def compute(self):
        per_class = self.total_ce / self.total_samples
        return {k: per_class[i] for i, k in enumerate(self._KEYS)}

    def reset(self):
        self.total_ce = jnp.zeros((_NUM_BOND_CLASSES,), jnp.float32)
        self.total_samples = jnp.zeros((), jnp.float32)


def _reference(pred_E, true_E, quantize_bf16=True):
    """Plain-JAX reference (torch BCE semantics) for correctness check."""
    d = pred_E.shape[-1]
    tgt = true_E.reshape(-1, d)
    mask = jnp.any(tgt != 0.0, axis=-1)
    pred = pred_E.reshape(-1, d)
    if quantize_bf16:
        # same logit quantization the kernel input path applies
        pred = pred.astype(jnp.bfloat16).astype(jnp.float32)
    prob = jax.nn.softmax(pred, axis=-1)
    log_p = jnp.maximum(jnp.log(prob), -100.0)
    log_1mp = jnp.maximum(jnp.log1p(-prob), -100.0)
    ce = -(tgt * log_p + (1.0 - tgt) * log_1mp)               # (N, d)
    ce = jnp.where(mask[:, None], ce, 0.0)
    return jnp.sum(ce, axis=0), jnp.sum(mask.astype(jnp.float32))


if __name__ == "__main__":
    key = jax.random.PRNGKey(0)
    bs, n, de, dx = 2, 8, _NUM_BOND_CLASSES, 4

    k1, k2, k3, k4 = jax.random.split(key, 4)
    masked_pred_E = jax.random.normal(k1, (bs, n, n, de), dtype=jnp.float32)
    # one-hot edge targets, with ~30% of rows zeroed (masked / padding rows)
    labels = jax.random.randint(k2, (bs, n, n), 0, de)
    keep = jax.random.uniform(k3, (bs, n, n)) > 0.3
    true_E = jax.nn.one_hot(labels, de, dtype=jnp.float32) * keep[..., None]
    # node tensors are accepted but unused, as in the reference module
    masked_pred_X = jax.random.normal(k4, (bs, n, dx), dtype=jnp.float32)
    true_X = jax.nn.one_hot(jax.random.randint(k4, (bs, n), 0, dx), dx)

    metrics = TrainMolecularMetricsDiscrete(dataset_infos=None)
    metrics(masked_pred_X, masked_pred_E, true_X, true_E, log=False)
    result = metrics.compute()
    vals = jax.block_until_ready(jnp.stack([result[k] for k in metrics._KEYS]))

    # tight check: identical math on the same bf16-quantized logits
    ref_ce, ref_cnt = _reference(masked_pred_E, true_E, quantize_bf16=True)
    ref_vals = ref_ce / ref_cnt
    assert jnp.allclose(vals, ref_vals, rtol=1e-4, atol=1e-4), (vals, ref_vals)

    # sanity check: metric-level fidelity vs the full-f32 torch-equivalent path
    f32_ce, f32_cnt = _reference(masked_pred_E, true_E, quantize_bf16=False)
    f32_vals = f32_ce / f32_cnt
    assert jnp.allclose(vals, f32_vals, rtol=1e-1, atol=1e-1), (vals, f32_vals)

    print("KERNEL_OK")
</pallas_src>

<mosaic_0001>
module attributes {stable_mosaic.version = 11 : i64} {
  func.func @_bond_ce_kernel(%arg0: i32, %arg1: i32, %arg2: memref<8x128xbf16, #tpu.memory_space<vmem>>, %arg3: memref<1x128xi32, #tpu.memory_space<vmem>>, %arg4: memref<8x128xf32, #tpu.memory_space<vmem>>) attributes {dimension_semantics = [#tpu.dimension_semantics<parallel>, #tpu.dimension_semantics<arbitrary>], iteration_bounds = array<i64: 1, 1>, scalar_prefetch = 0 : i64, scratch_operands = 0 : i64, tpu.core_type = #tpu.core_type<tc>, window_params = [{transform_indices = @transform_0, window_bounds = array<i64: 8, 128>}, {transform_indices = @transform_1, window_bounds = array<i64: 1, 128>}, {transform_indices = @transform_2, window_bounds = array<i64: 8, 128>}]} {
    %c0_i32 = arith.constant 0 : i32
    %0 = arith.cmpi eq, %arg1, %c0_i32 : i32
    %1 = arith.extui %0 : i1 to i32
    %c0_i32_0 = arith.constant 0 : i32
    %2 = arith.cmpi ne, %1, %c0_i32_0 : i32
    scf.if %2 {
      %cst_13 = arith.constant 0.000000e+00 : f32
      %44 = vector.broadcast %cst_13 : f32 to vector<8x128xf32>
      %c0_14 = arith.constant 0 : index
      %c0_15 = arith.constant 0 : index
      %45 = vector.load %arg4[%c0_14, %c0_15] : memref<8x128xf32, #tpu.memory_space<vmem>>, vector<8x128xf32>
      tpu.vector_store %arg4[%c0_14, %c0_15], %44 {strides = array<i32>} : memref<8x128xf32, #tpu.memory_space<vmem>>, vector<8x128xf32>,
    } else {
    }
    %c0 = arith.constant 0 : index
    %c0_1 = arith.constant 0 : index
    %3 = vector.load %arg2[%c0, %c0_1] : memref<8x128xbf16, #tpu.memory_space<vmem>>, vector<8x128xbf16>
    %4 = arith.extf %3 : vector<8x128xbf16> to vector<8x128xf32>
    %c0_2 = arith.constant 0 : index
    %c0_3 = arith.constant 0 : index
    %5 = vector.load %arg3[%c0_2, %c0_3] : memref<1x128xi32, #tpu.memory_space<vmem>>, vector<1x128xi32>
    %cst = arith.constant dense<0xFF800000> : vector<128xf32>
    %6 = vector.multi_reduction <maximumf>, %4, %cst [0] : vector<8x128xf32> to vector<128xf32>
    %7 = vector.shape_cast %6 : vector<128xf32> to vector<1x128xf32>
    %8 = vector.broadcast %7 : vector<1x128xf32> to vector<8x128xf32>
    %9 = arith.subf %4, %8 : vector<8x128xf32>
    %10 = math.exp %9 : vector<8x128xf32>
    %cst_4 = arith.constant dense<0.000000e+00> : vector<128xf32>
    %11 = vector.multi_reduction <add>, %10, %cst_4 [0] : vector<8x128xf32> to vector<128xf32>
    %12 = vector.shape_cast %11 : vector<128xf32> to vector<1x128xf32>
    %13 = math.log %12 : vector<1x128xf32>
    %14 = tpu.iota {dimensions = array<i32: 0>} : vector<8x128xi32>
    %15 = vector.broadcast %5 : vector<1x128xi32> to vector<8x128xi32>
    %16 = arith.cmpi eq, %14, %15 : vector<8x128xi32>
    %17 = vector.broadcast %12 : vector<1x128xf32> to vector<8x128xf32>
    %18 = arith.subf %17, %10 : vector<8x128xf32>
    %19 = math.log %18 : vector<8x128xf32>
    %20 = arith.select %16, %9, %19 : vector<8x128xi1>, vector<8x128xf32>
    %21 = vector.broadcast %13 : vector<1x128xf32> to vector<8x128xf32>
    %22 = arith.subf %20, %21 : vector<8x128xf32>
    %cst_5 = arith.constant -1.000000e+02 : f32
    %23 = vector.broadcast %cst_5 : f32 to vector<8x128xf32>
    %24 = arith.maximumf %22, %23 : vector<8x128xf32>
    %c0_i32_6 = arith.constant 0 : i32
    %25 = vector.broadcast %c0_i32_6 : i32 to vector<1x128xi32>
    %26 = arith.cmpi sge, %5, %25 : vector<1x128xi32>
    %27 = arith.extui %26 : vector<1x128xi1> to vector<1x128xi32>
    %28 = arith.sitofp %27 : vector<1x128xi32> to vector<1x128xf32>
    %cst_7 = arith.constant 0.000000e+00 : f32
    %29 = vector.broadcast %cst_7 : f32 to vector<1x128xf32>
    %30 = arith.subf %29, %28 : vector<1x128xf32>
    %31 = vector.broadcast %30 : vector<1x128xf32> to vector<8x128xf32>
    %32 = arith.mulf %24, %31 : vector<8x128xf32>
    %33 = tpu.iota {dimensions = array<i32: 0>} : vector<8x128xi32>
    %c0_8 = arith.constant 0 : index
    %c0_9 = arith.constant 0 : index
    %34 = vector.load %arg4[%c0_8, %c0_9] : memref<8x128xf32, #tpu.memory_space<vmem>>, vector<8x128xf32>
    %c7_i32 = arith.constant 7 : i32
    %35 = vector.broadcast %c7_i32 : i32 to vector<8x128xi32>
    %36 = arith.cmpi eq, %33, %35 : vector<8x128xi32>
    %cst_10 = arith.constant 0.000000e+00 : f32
    %37 = vector.shape_cast %28 : vector<1x128xf32> to vector<1x128xf32>
    %38 = vector.broadcast %37 : vector<1x128xf32> to vector<8x128xf32>
    %39 = vector.broadcast %cst_10 : f32 to vector<8x128xf32>
    %40 = arith.select %36, %38, %39 : vector<8x128xi1>, vector<8x128xf32>
    %41 = arith.addf %32, %40 : vector<8x128xf32>
    %42 = arith.addf %34, %41 : vector<8x128xf32>
    %c0_11 = arith.constant 0 : index
    %c0_12 = arith.constant 0 : index
    %43 = vector.load %arg4[%c0_11, %c0_12] : memref<8x128xf32, #tpu.memory_space<vmem>>, vector<8x128xf32>
    tpu.vector_store %arg4[%c0_11, %c0_12], %42 {strides = array<i32>} : memref<8x128xf32, #tpu.memory_space<vmem>>, vector<8x128xf32>,
    return
  }
  func.func @transform_0(%arg0: i32, %arg1: i32) -> (i32, i32) {
    %c1_i32 = arith.constant 1 : i32
    %0 = arith.muli %arg0, %c1_i32 : i32
    %1 = arith.addi %0, %arg1 : i32
    %c0_i32 = arith.constant 0 : i32
    %c0_i32_0 = arith.constant 0 : i32
    return %c0_i32, %1 : i32, i32
  }
  func.func @transform_1(%arg0: i32, %arg1: i32) -> (i32, i32) {
    %c1_i32 = arith.constant 1 : i32
    %0 = arith.muli %arg0, %c1_i32 : i32
    %1 = arith.addi %0, %arg1 : i32
    %c0_i32 = arith.constant 0 : i32
    %c0_i32_0 = arith.constant 0 : i32
    return %c0_i32, %1 : i32, i32
  }
  func.func @transform_2(%arg0: i32, %arg1: i32) -> (i32, i32) {
    %c0_i32 = arith.constant 0 : i32
    %c0_i32_0 = arith.constant 0 : i32
    return %arg0, %c0_i32 : i32, i32
  }
}

</mosaic_0001>

<llo_original>
// kernel: bond_metrics_ce_update.1
$region0: #{bond_metrics_ce_update.1}
  #allocation0 [shape = 'u32[]', space=smem, size = 0x4, offset = 0x4, fixed_abs, tag = 'smem constant byte address 0x4 - core index']
  #allocation1 [shape = 'u32[144,128]{1,0:T(1,128)}', space=vmem, size = 0x12000, scoped, tag = 'internal scratch']
  %s0 = inlined_call_operand.vmem [shape: bf16[8,128], index: 0, kind: input, shape index: {}]
  %s1 = inlined_call_operand.vmem [shape: s32[1,128], index: 1, kind: input, shape index: {}]
  %s2 = inlined_call_operand.vmem [shape: f32[8,128], index: 2, kind: output, shape index: {}]
  %s3 = sld [smem:[#allocation0]]
  $region22: #{bond_metrics_ce_update.1} parent=0
    _
  %s5 = ssub.s32 1, %s3
  %s6 = scalar_select 0, %s5, %s3
  // Predicated region
  $region2: #{bond_metrics_ce_update.1} parent=0 // pred_check
    _
  $region3: #{bond_metrics_ce_update.1} parent=0 // pred_check_branch
    %8 = sbr.rel (0) target = $region5
  $region4: #{bond_metrics_ce_update.1} parent=0 // pred_region
    %s9 = sadd.s32 0, 0
    %p10 = scmp.lt.s32.totalorder %s9, 0
    %s11 = scalar_select %p10, %s9, 0
    %s12 = smul.addr %s11, 4
    %s13 = scalar_lea.vmem %s0, %s12
    %s14 = sadd.s32 0, 0
  $region5: #{bond_metrics_ce_update.1} parent=0 // pred_fallthru
    _
  // Predicated region
  $region6: #{bond_metrics_ce_update.1} parent=0 // pred_check
    _
  $region7: #{bond_metrics_ce_update.1} parent=0 // pred_check_branch
    %16 = sbr.rel (0) target = $region9
  $region8: #{bond_metrics_ce_update.1} parent=0 // pred_region
    %s17 = sadd.s32 0, 0
    %p18 = scmp.lt.s32.totalorder %s17, 0
    %s19 = scalar_select %p18, %s17, 0
    %s20 = scalar_lea.vmem %s1, %s19
    %s21 = sadd.s32 0, 0
  $region9: #{bond_metrics_ce_update.1} parent=0 // pred_fallthru
    _
  %s22 = sadd.s32 0, 0
  %p23 = scmp.lt.s32.totalorder %s22, 0
  %s24 = scalar_select %p23, %s22, 0
  %s25 = smul.addr %s24, 4
  %s26 = scalar_lea.vmem %s0, %s25
  %s27 = sadd.s32 0, 0
  %p28 = scmp.lt.s32.totalorder %s27, 0
  %s29 = scalar_select %p28, %s27, 0
  %s30 = scalar_lea.vmem %s1, %s29
  %s31 = sadd.s32 0, 0
  %p32 = scmp.lt.s32.totalorder %s31, 0
  %s33 = scalar_select %p32, %s31, 0
  %s34 = smul.addr %s33, 4
  %s35 = scalar_lea.vmem %s0, %s34
  %s36 = sadd.s32 0, 0
  %s37 = sadd.s32 0, 0
  %p38 = scmp.lt.s32.totalorder %s37, 0
  %s39 = scalar_select %p38, %s37, 0
  %s40 = scalar_lea.vmem %s1, %s39
  %s41 = sadd.s32 0, 0
  %p42 = scmp.eq.s32.totalorder 0, 0
  // Predicated region
  $region10: #{bond_metrics_ce_update.1} parent=0 // pred_check
    %p43 = pneg %p42
  $region11: #{bond_metrics_ce_update.1} parent=0 // pred_check_branch
    %45 = sbr.rel (%p43) target = $region13
  $region12: #{bond_metrics_ce_update.1} parent=0 // pred_region
    %46 = vst [vmem:[%s2] sm:$0xff] 0.0
  $region13: #{bond_metrics_ce_update.1} parent=0 // pred_fallthru
    _
  %v47 = vld [vmem:[%s35] sm:$0xf]
  %v48 = vunpack.c.l.bf16 %v47
  %v49 = vld [vmem:[%s40] sm:$0x1]
  %v50 = vrot.slane %v48, 4
  %v51 = vmax.f32 %v48, %v50
  %v52 = vrot.slane %v51, 2
  %v53 = vmax.f32 %v51, %v52
  %v54 = vrot.slane %v53, 1
  %v55 = vmax.f32 %v53, %v54
  %v56 = vsub.f32 %v48, %v55
  %v57 = vmul.f32 %v56, 1.442695
  %v58 = vpow.pop %v57
  %v59 = vrot.slane %v58, 4
  %v60 = vadd.f32 %v58, %v59
  %v61 = vrot.slane %v60, 2
  %v62 = vadd.f32 %v60, %v61
  %v63 = vrot.slane %v62, 1
  %v64 = vadd.f32 %v62, %v63
  %v65 = vlog2.pop %v64
  %v66 = vmul.f32 %v65, 0.6931472
  %v67 = vlaneseq
  %v68 = vshrl.u32 %v67, 7
  %v69 = vlaneseq
  %v70 = vshrl.u32 %v69, 7
  %v71 = vsub.s32 0, %v70
  %v72 = vrot.slane %v49, %v71
  %vm73 = vcmp.eq.s32.totalorder %v68, %v72
  %v74 = vsub.f32 %v64, %v58
  %v75 = vlog2.pop %v74
  %v76 = vmul.f32 %v75, 0.6931472
  %v77 = vsel %vm73, %v56, %v76
  %v78 = vsub.f32 %v77, %v66
  %v79 = vmax.f32 %v78, -100.0
  %vm80 = vcmp.ge.s32.totalorder %v49, 0
  %v81 = vsel %vm80, 1, 0
  %v82 = vcvt.s32.f32 %v81
  %v83 = vsub.f32 0.0, %v82
  %v85 = vlaneseq
  %v86 = vshrl.u32 %v85, 7
  %v87 = vsub.s32 0, %v86
  %v88 = vrot.slane %v83, %v87
  %v90 = vmul.f32 %v79, %v88
  %v91 = vld [vmem:[%s2] sm:$0xff]
  %vm92 = vcmp.eq.s32.totalorder %v68, 7
  %v94 = vlaneseq
  %v95 = vshrl.u32 %v94, 7
  %v96 = vsub.s32 0, %v95
  %v97 = vrot.slane %v82, %v96
  %v99 = vsel %vm92, %v97, 0.0
  %v100 = vadd.f32 %v90, %v99
  %v101 = vadd.f32 %v91, %v100
  %102 = vst [vmem:[%s2] sm:$0xff] %v101
  // Predicated region
  $region14: #{bond_metrics_ce_update.1} parent=0 // pred_check
    _
  $region15: #{bond_metrics_ce_update.1} parent=0 // pred_check_branch
    %104 = sbr.rel (0) target = $region17
  $region16: #{bond_metrics_ce_update.1} parent=0 // pred_region
    _
  $region17: #{bond_metrics_ce_update.1} parent=0 // pred_fallthru
    _
  // Predicated region
  $region18: #{bond_metrics_ce_update.1} parent=0 // pred_check
    _
  $region19: #{bond_metrics_ce_update.1} parent=0 // pred_check_branch
    %106 = sbr.rel (0) target = $region21
  $region20: #{bond_metrics_ce_update.1} parent=0 // pred_region
    _
  $region21: #{bond_metrics_ce_update.1} parent=0 // pred_fallthru
    _

</llo_original>
